<compile_context>
chip_gen: v5e
topology: v5e:2x2
jax: 0.10.0
libtpu: 0.0.40
codegen_flags: <defaults>
</compile_context>

<pallas_src>
import functools

import jax
import jax.numpy as jnp
from jax.experimental import pallas as pl
from jax.experimental.pallas import tpu as pltpu


# ---------------------------------------------------------------------------
# Kernels
# ---------------------------------------------------------------------------

def _write_mean_std(out_ref, mean, std):
    """Single stacked store of mean/std into a (rows, 2) output block."""
    col = jax.lax.broadcasted_iota(jnp.int32, out_ref.shape, 1)   # (rows, 2)
    out_ref[...] = jnp.where(col == 0, mean, std).astype(out_ref.dtype)


def _mean_std_full_kernel(x_ref, out_ref):
    """Single-pass kernel: full time axis resident in VMEM.

    x_ref:   (rb, T)
    out_ref: (rb, 2)   [column 0 = mean, column 1 = std]
    """
    x = x_ref[...].astype(jnp.float32)                       # (rb, T)
    t = x.shape[-1]
    s = jnp.sum(x, axis=-1, keepdims=True)                   # (rb, 1)
    sq = jnp.sum(x * x, axis=-1, keepdims=True)               # (rb, 1)
    mean = s * (1.0 / t)
    # unbiased variance (torch.std_mean default, correction=1); T==1 -> NaN.
    inv_tm1 = (1.0 / (t - 1)) if t > 1 else float("nan")
    var = jnp.maximum((sq - s * mean) * inv_tm1, 0.0)
    std = jnp.sqrt(var)
    _write_mean_std(out_ref, mean, std)


def _mean_std_stream_kernel(x_ref, out_ref, sum_sc, sq_sc, *, t_total):
    """T-tiled streaming kernel with running sum / sum-of-squares accumulators.

    x_ref:   (rb, tt)     (grid axis 1 walks the T blocks)
    out_ref: (rb, 2)      written only on the last T block
    sum_sc:  (rb, 1) f32 VMEM scratch
    sq_sc:   (rb, 1) f32 VMEM scratch
    """
    tk = pl.program_id(1)
    is_last = tk == pl.num_programs(1) - 1
    t_block = x_ref.shape[-1]
    has_tail = (t_total % t_block) != 0          # static Python bool

    @pl.when(tk == 0)
    def _():
        sum_sc[...] = jnp.zeros_like(sum_sc)
        sq_sc[...] = jnp.zeros_like(sq_sc)

    def _accumulate(x):
        sum_sc[...] += jnp.sum(x, axis=-1, keepdims=True)
        sq_sc[...] += jnp.sum(x * x, axis=-1, keepdims=True)

    if has_tail:
        # Mask only the (partial) last block; full blocks stay unmasked.
        @pl.when(jnp.logical_not(is_last))
        def _():
            _accumulate(x_ref[...].astype(jnp.float32))

        @pl.when(is_last)
        def _():
            x = x_ref[...].astype(jnp.float32)
            idx = jax.lax.broadcasted_iota(jnp.int32, (1, t_block), 1)
            valid = (tk * t_block + idx) < t_total
            _accumulate(jnp.where(valid, x, 0.0))
    else:
        _accumulate(x_ref[...].astype(jnp.float32))

    @pl.when(is_last)
    def _():
        s = sum_sc[...]
        mean = s * (1.0 / t_total)
        inv_tm1 = (1.0 / (t_total - 1)) if t_total > 1 else float("nan")
        # sum((x-m)^2) == sum(x^2) - m*sum(x); clamp against cancellation.
        var = jnp.maximum((sq_sc[...] - s * mean) * inv_tm1, 0.0)
        std = jnp.sqrt(var)
        _write_mean_std(out_ref, mean, std)


# ---------------------------------------------------------------------------
# Wrapper
# ---------------------------------------------------------------------------

def _round_up(n, m):
    return ((n + m - 1) // m) * m


def _tpu_tuning():
    """Per-generation tile budget, VMEM limit and TensorCores-per-chip."""
    kind = ""
    try:
        kind = jax.devices()[0].device_kind.lower().replace(" ", "")
    except Exception:  # pragma: no cover - defensive
        pass
    mib = 1024 * 1024
    if "v7" in kind or "7x" in kind:
        # 2 TCs/chip, 64 MiB physical VMEM, 3.2 TB/s HBM: big blocks, but
        # leave headroom under the smaller physical VMEM.
        return dict(target_block_bytes=8 * mib, vmem_limit_bytes=56 * mib, ntc=2)
    if "v6" in kind:
        # 1 TC/chip, 128 MiB physical VMEM: plenty of headroom.
        return dict(target_block_bytes=12 * mib, vmem_limit_bytes=96 * mib, ntc=1)
    if "v5lite" in kind or "v5e" in kind:
        # 1 TC/chip; 16 MiB scoped default must be raised explicitly.
        return dict(target_block_bytes=6 * mib, vmem_limit_bytes=48 * mib, ntc=1)
    # Unknown generation: conservative settings that fit every physical VMEM.
    return dict(target_block_bytes=6 * mib, vmem_limit_bytes=48 * mib, ntc=1)


def mean_std_pool1d(x, *, target_block_bytes=None, vmem_limit_bytes=None):
    """Pallas implementation of MeanStdPool1d() (kernel_size=None).

    Args:
      x: f32/bf16 [B, C, T]
      target_block_bytes: per-block VMEM budget for the input tile
        (default: per-generation, see _tpu_tuning()).
      vmem_limit_bytes: scoped VMEM limit passed to Mosaic (default:
        per-generation).
    Returns:
      [B, 2*C, 1] = concat([mean, std], axis=1)  (same dtype as x)
    """
    B, C, T = x.shape
    R = B * C
    itemsize = jnp.dtype(x.dtype).itemsize

    tuning = _tpu_tuning()
    if target_block_bytes is None:
        target_block_bytes = tuning["target_block_bytes"]
    if vmem_limit_bytes is None:
        vmem_limit_bytes = tuning["vmem_limit_bytes"]
    ntc = tuning["ntc"]

    # Free 2-D view: rows = B*C on sublanes, T on lanes.
    x2 = x.reshape(R, T)
    out_struct = jax.ShapeDtypeStruct((R, 2), x.dtype)
    cost = pl.CostEstimate(
        flops=3 * R * T,
        transcendentals=R,
        bytes_accessed=R * T * itemsize + R * 2 * itemsize,
    )

    rb_min = min(R, 8)
    if rb_min * T * itemsize <= target_block_bytes or T < 128:
        # --- single-pass full-T path, tiled over rows ---
        cap_rows = max(rb_min, target_block_bytes // max(1, T * itemsize))
        if ntc > 1 and R > 8:
            # Only split for megacore sharding on chips that actually have
            # 2 TensorCores (v7x); on v5e/v6e it would just add grid steps.
            per_core = _round_up(pl.cdiv(R, ntc), 8)
            if per_core < R:
                cap_rows = min(cap_rows, per_core)
        if cap_rows >= R:
            rb = R
        else:
            rb = max(8, (cap_rows // 8) * 8)
        out = pl.pallas_call(
            _mean_std_full_kernel,
            out_shape=out_struct,
            grid=(pl.cdiv(R, rb),),
            in_specs=[pl.BlockSpec((rb, T), lambda r: (r, 0))],
            out_specs=pl.BlockSpec((rb, 2), lambda r: (r, 0)),
            compiler_params=pltpu.CompilerParams(
                dimension_semantics=("parallel",),
                vmem_limit_bytes=vmem_limit_bytes),
            cost_estimate=cost,
        )(x2)
    else:
        # --- T-tiled streaming path (long sequences / tight VMEM) ---
        rb = min(R, 8)
        lanes_budget = max(128, target_block_bytes // max(1, rb * itemsize))
        t_floor = (T // 128) * 128                     # T >= 128 here
        tt = max(128, min(t_floor, (lanes_budget // 128) * 128))
        if T % tt != 0:
            # Accept an exact divisor only if it keeps the tile >= ~50% of
            # the computed size (avoid collapsing to 128-lane tiles);
            # otherwise keep tt large and mask one tail block.
            lo = max(128, ((tt // 2) // 128) * 128)
            for cand in range(tt, lo - 1, -128):
                if T % cand == 0:
                    tt = cand
                    break
        out = pl.pallas_call(
            functools.partial(_mean_std_stream_kernel, t_total=T),
            out_shape=out_struct,
            grid=(pl.cdiv(R, rb), pl.cdiv(T, tt)),
            in_specs=[pl.BlockSpec((rb, tt), lambda r, t: (r, t))],
            out_specs=pl.BlockSpec((rb, 2), lambda r, t: (r, 0)),
            scratch_shapes=[
                pltpu.VMEM((rb, 1), jnp.float32),
                pltpu.VMEM((rb, 1), jnp.float32),
            ],
            compiler_params=pltpu.CompilerParams(
                dimension_semantics=("parallel", "arbitrary"),
                vmem_limit_bytes=vmem_limit_bytes),
            cost_estimate=cost,
        )(x2)

    # Tiny layout plumbing back to the PyTorch output shape (B, 2*C, 1).
    mean = out[:, 0].reshape(B, C, 1)
    std = out[:, 1].reshape(B, C, 1)
    return jnp.concatenate([mean, std], axis=1)


# ---------------------------------------------------------------------------
# Reference + test
# ---------------------------------------------------------------------------

def _reference(x):
    mean = jnp.mean(x, axis=2, keepdims=True)
    var = jnp.sum((x - mean) ** 2, axis=2, keepdims=True) / (x.shape[2] - 1)
    std = jnp.sqrt(var)
    return jnp.concatenate([mean, std], axis=1)


if __name__ == "__main__":
    key = jax.random.PRNGKey(0)

    # Test 1: single-pass (full-T, row-tiled) path with module-like shapes.
    B, C, T = 2, 4, 16
    x = jax.random.normal(key, (B, C, T), dtype=jnp.float32)
    out = jax.block_until_ready(mean_std_pool1d(x))
    ref = _reference(x)
    assert out.shape == (B, 2 * C, 1), out.shape
    assert jnp.allclose(out, ref, atol=1e-4, rtol=1e-4), "mismatch (full path)"

    # Test 2: force the T-tiled streaming path (tiny budget). T=160 is not a
    # multiple of 128, exercising the last-block-only masking.
    B2, C2, T2 = 2, 4, 160
    x2 = jax.random.normal(jax.random.PRNGKey(0), (B2, C2, T2), dtype=jnp.float32)
    out2 = jax.block_until_ready(mean_std_pool1d(x2, target_block_bytes=1024))
    ref2 = _reference(x2)
    assert out2.shape == (B2, 2 * C2, 1), out2.shape
    assert jnp.allclose(out2, ref2, atol=1e-4, rtol=1e-4), "mismatch (stream path)"

    print("KERNEL_OK")
</pallas_src>

<mosaic_0001>
module attributes {stable_mosaic.version = 11 : i64} {
  func.func @_mean_std_full_kernel(%arg0: i32, %arg1: memref<8x16xf32, #tpu.memory_space<vmem>>, %arg2: memref<8x2xf32, #tpu.memory_space<vmem>>) attributes {dimension_semantics = [#tpu.dimension_semantics<parallel>], iteration_bounds = array<i64: 1>, scalar_prefetch = 0 : i64, scratch_operands = 0 : i64, tpu.core_type = #tpu.core_type<tc>, window_params = [{transform_indices = @transform_0, window_bounds = array<i64: 8, 16>}, {transform_indices = @transform_1, window_bounds = array<i64: 8, 2>}]} {
    %c0 = arith.constant 0 : index
    %c0_0 = arith.constant 0 : index
    %0 = vector.load %arg1[%c0, %c0_0] : memref<8x16xf32, #tpu.memory_space<vmem>>, vector<8x16xf32>
    %cst = arith.constant dense<0.000000e+00> : vector<8xf32>
    %1 = vector.multi_reduction <add>, %0, %cst [1] : vector<8x16xf32> to vector<8xf32>
    %2 = vector.shape_cast %1 : vector<8xf32> to vector<8x1xf32>
    %3 = arith.mulf %0, %0 : vector<8x16xf32>
    %cst_1 = arith.constant dense<0.000000e+00> : vector<8xf32>
    %4 = vector.multi_reduction <add>, %3, %cst_1 [1] : vector<8x16xf32> to vector<8xf32>
    %5 = vector.shape_cast %4 : vector<8xf32> to vector<8x1xf32>
    %cst_2 = arith.constant 6.250000e-02 : f32
    %6 = vector.broadcast %cst_2 : f32 to vector<8x1xf32>
    %7 = arith.mulf %2, %6 : vector<8x1xf32>
    %8 = arith.mulf %2, %7 : vector<8x1xf32>
    %9 = arith.subf %5, %8 : vector<8x1xf32>
    %cst_3 = arith.constant 0.0666666701 : f32
    %10 = vector.broadcast %cst_3 : f32 to vector<8x1xf32>
    %11 = arith.mulf %9, %10 : vector<8x1xf32>
    %cst_4 = arith.constant 0.000000e+00 : f32
    %12 = vector.broadcast %cst_4 : f32 to vector<8x1xf32>
    %13 = arith.maximumf %11, %12 : vector<8x1xf32>
    %14 = math.sqrt %13 : vector<8x1xf32>
    %15 = tpu.iota {dimensions = array<i32: 1>} : vector<8x2xi32>
    %c0_i32 = arith.constant 0 : i32
    %16 = vector.broadcast %c0_i32 : i32 to vector<8x2xi32>
    %17 = arith.cmpi eq, %15, %16 : vector<8x2xi32>
    %18 = vector.shape_cast %7 : vector<8x1xf32> to vector<8x1xf32>
    %19 = vector.broadcast %18 : vector<8x1xf32> to vector<8x2xf32>
    %20 = vector.shape_cast %14 : vector<8x1xf32> to vector<8x1xf32>
    %21 = vector.broadcast %20 : vector<8x1xf32> to vector<8x2xf32>
    %22 = arith.select %17, %19, %21 : vector<8x2xi1>, vector<8x2xf32>
    %c0_5 = arith.constant 0 : index
    %c0_6 = arith.constant 0 : index
    %23 = vector.load %arg2[%c0_5, %c0_6] : memref<8x2xf32, #tpu.memory_space<vmem>>, vector<8x2xf32>
    tpu.vector_store %arg2[%c0_5, %c0_6], %22 {strides = array<i32>} : memref<8x2xf32, #tpu.memory_space<vmem>>, vector<8x2xf32>,
    return
  }
  func.func @transform_0(%arg0: i32) -> (i32, i32) {
    %c0_i32 = arith.constant 0 : i32
    %c0_i32_0 = arith.constant 0 : i32
    return %arg0, %c0_i32 : i32, i32
  }
  func.func @transform_1(%arg0: i32) -> (i32, i32) {
    %c0_i32 = arith.constant 0 : i32
    %c0_i32_0 = arith.constant 0 : i32
    return %arg0, %c0_i32 : i32, i32
  }
}

</mosaic_0001>

<llo_original>
// kernel: tpu_custom_call.1
$region0: #{tpu_custom_call.1}
  #allocation0 [shape = 'u32[]', space=smem, size = 0x4, offset = 0x4, fixed_abs, tag = 'smem constant byte address 0x4 - core index']
  #allocation1 [shape = 'u32[72,128]{1,0:T(1,128)}', space=vmem, size = 0x9000, scoped, tag = 'internal scratch']
  %s0 = inlined_call_operand.hbm [shape: f32[8,16], index: 0, kind: input, shape index: {}]
  %s1 = inlined_call_operand.vmem [shape: f32[8,2], index: 1, kind: output, shape index: {}]
  %s2 = sld [smem:[#allocation0]]
  $region18: #{tpu_custom_call.1} parent=0
    _
  %s4 = ssub.s32 1, %s2
  %s5 = scalar_select 0, %s4, %s2
  $region1: #{tpu_custom_call.1} parent=0
    #allocation2 [shape = 'u8[4096]{0}', space=vmem, size = 0x1000, scoped, tag = 'input window, operand 0, single buffered']
    #allocation3 [shape = 's32[1]{0}', space=sflag, size = 0x4, scoped, tag = 'scoped memory for tpu_custom_call.1']
    %6 = vsyncpa [#allocation3], 0
    // Predicated region
    $region2: #{tpu_custom_call.1} parent=1 // pred_check
      _
    $region3: #{tpu_custom_call.1} parent=1 // pred_check_branch
      %8 = sbr.rel (0) target = $region5
    $region4: #{tpu_custom_call.1} parent=1 // pred_region
      %10 = vsyncadd [#allocation3], 0
      %s12 = sshll.u32 %s0, 4
      %s13 = int_to_ptr.hbm [resolvable:$true] %s12
      %s14 = sshll.u32 [#allocation2], 4
      %s15 = int_to_ptr.vmem [resolvable:$true] %s14
      %17 = dma.hbm_to_vmem [thread:$0]  %s13, 128, %s15, [#allocation3]
    $region5: #{tpu_custom_call.1} parent=1 // pred_fallthru
      _
    // Predicated region
    $region6: #{tpu_custom_call.1} parent=1 // pred_check
      _
    $region7: #{tpu_custom_call.1} parent=1 // pred_check_branch
      %19 = sbr.rel (0) target = $region9
    $region8: #{tpu_custom_call.1} parent=1 // pred_region
      %21 = dma.done [#allocation3], 128
    $region9: #{tpu_custom_call.1} parent=1 // pred_fallthru
      _
    %v22 = vld [vmem:[#allocation2] sm:$0xff]
    %vm23 = vcmask 130048
    %v24 = vsel %vm23, %v22, 0.0
    %25 = vadd.xlane.f32.xlu0 %v24
    %v26 = vpop.xlane.xlu0 %25
    %v27 = vmul.f32 %v22, %v22
    %v28 = vsel %vm23, %v27, 0.0
    %29 = vadd.xlane.f32.xlu0 %v28
    %v30 = vpop.xlane.xlu0 %29
    %v31 = vmul.f32 %v26, 0.0625
    %v32 = vmul.f32 %v26, %v31
    %v33 = vsub.f32 %v30, %v32
    %v34 = vmul.f32 %v33, 0.06666667
    %v35 = vmax.f32 %v34, 0.0
    %v36 = vrsqrt.pop %v35
    %v37 = vmul.f32 %v36, %v35
    %v38 = vmul.f32 %v37, %v36
    %v39 = vmul.f32 0.5, %v38
    %v40 = vsub.f32 1.5, %v39
    %v41 = vmul.f32 %v36, %v40
    %v42 = vmul.f32 %v35, %v41
    %vm43 = vcmp.eq.f32.partialorder %v35, inf
    %v44 = vsel %vm43, %v35, %v42
    %vm45 = vcmp.eq.f32.partialorder %v35, 0.0
    %v46 = vand.u32 %v35, 2147483648
    %v47 = vsel %vm45, %v46, %v44
    %v48 = vlaneseq
    %v49 = vand.u32 %v48, 127
    %vm50 = vcmp.eq.s32.totalorder %v49, 0
    %v51 = vsel %vm50, %v31, %v47
    %vm52 = vcmask 15360
    %53 = vst.msk [vmem:[%s1] sm:$0xff] %vm52, %v51
    // Predicated region
    $region10: #{tpu_custom_call.1} parent=1 // pred_check
      _
    $region11: #{tpu_custom_call.1} parent=1 // pred_check_branch
      %55 = sbr.rel (0) target = $region13
    $region12: #{tpu_custom_call.1} parent=1 // pred_region
      _
    $region13: #{tpu_custom_call.1} parent=1 // pred_fallthru
      _
    // Predicated region
    $region14: #{tpu_custom_call.1} parent=1 // pred_check
      _
    $region15: #{tpu_custom_call.1} parent=1 // pred_check_branch
      %57 = sbr.rel (0) target = $region17
    $region16: #{tpu_custom_call.1} parent=1 // pred_region
      _
    $region17: #{tpu_custom_call.1} parent=1 // pred_fallthru
      _
    %58 = vsyncpa [#allocation3], 1

</llo_original>
